<compile_context>
chip_gen: v6e
topology: v6e:2x2x1
jax: 0.10.0
libtpu: 0.0.40
codegen_flags: <defaults>
</compile_context>

<pallas_src>
import math

import jax
import jax.numpy as jnp
from jax import lax
from jax.experimental import pallas as pl
from jax.experimental.pallas import tpu as pltpu

INPUT_DIM = 4
HIDDEN_DIM = 3
OUTPUT_DIM = 1

SUB = 8                         # vreg sublanes (f32)
LANE = 128                      # vreg lanes
MIN_BATCH_BLOCK = SUB * LANE    # 1024: smallest dense (8,128) batch slab
TILE_BATCH_DEFAULT = 128 * 1024 # 2^17 batch elems / grid tile (2 MiB input)
CHUNK_LANES = 512               # in-kernel chunk: <=4 vregs per feature slab


def mlp_kernel(x_ref, w1_ref, b1_ref, w2_ref, b2_ref, o_ref):
    """Fused 4->3->1 MLP with ReLUs, VPU-only, sublane+lane dense.

    x_ref : (4, 8, TBL) f32 VMEM  -- feature k slab = x_ref[k] is (8, TBL),
                                     batch dense over sublanes and lanes.
    w1_ref: (12,) f32 SMEM  row-major W1 (3 x 4)
    b1_ref: (3,)  f32 SMEM
    w2_ref: (3,)  f32 SMEM  W2 row (1 x 3)
    b2_ref: (1,)  f32 SMEM
    o_ref : (8, TBL) f32 VMEM  -- same (sublane, lane) <-> batch mapping.
    """
    tbl = x_ref.shape[2]                       # static (block shape)
    chunk = math.gcd(tbl, CHUNK_LANES)         # 128 / 256 / 512 lanes
    n_chunks = tbl // chunk

    # Hoist the 19 parameter scalars out of the chunk loop (SMEM scalar reads).
    w1 = [[w1_ref[j * INPUT_DIM + k] for k in range(INPUT_DIM)]
          for j in range(HIDDEN_DIM)]
    b1 = [b1_ref[j] for j in range(HIDDEN_DIM)]
    w2 = [w2_ref[j] for j in range(HIDDEN_DIM)]
    b2 = b2_ref[0]

    def compute_chunk(off):
        # Four dense (8, chunk) feature slabs for this lane window.
        xs = [x_ref[k, :, pl.ds(off, chunk)] for k in range(INPUT_DIM)]
        y = None
        for j in range(HIDDEN_DIM):
            # Pairwise tree keeps the serial FMA chain short.
            t01 = w1[j][0] * xs[0] + w1[j][1] * xs[1]
            t23 = w1[j][2] * xs[2] + w1[j][3] * xs[3]
            h = jnp.maximum(t01 + t23 + b1[j], 0.0)
            contrib = w2[j] * h
            y = contrib if y is None else y + contrib
        # Lane-dense (chunk is a multiple of 128) -> unmasked stores.
        o_ref[:, pl.ds(off, chunk)] = jnp.maximum(y + b2, 0.0)

    if n_chunks <= 4:
        # Short trip count: unroll statically (best LLO scheduling).
        for c in range(n_chunks):
            compute_chunk(c * chunk)
    else:
        # Long trip count: compact fori_loop, no code-size blow-up.
        def body(c, carry):
            compute_chunk(pl.multiple_of(c * chunk, chunk))
            return carry
        lax.fori_loop(0, n_chunks, body, 0)


def neural_network_forward(x, w1, b1, w2, b2, *, tile_batch=TILE_BATCH_DEFAULT):
    """x: (B, 4) -> (B, 1) float32, same math as the PyTorch module."""
    assert x.ndim == 2 and x.shape[1] == INPUT_DIM
    assert tile_batch % MIN_BATCH_BLOCK == 0
    batch = x.shape[0]

    # Pad the batch to a dense (8,128) slab multiple; to a tile multiple when
    # we have to fall into the grid path.
    b_pad = -(-batch // MIN_BATCH_BLOCK) * MIN_BATCH_BLOCK
    if b_pad <= tile_batch:
        num_tiles = 1
    else:
        b_pad = -(-b_pad // tile_batch) * tile_batch
        num_tiles = b_pad // tile_batch
    bc = b_pad // SUB                              # lanes of the dense layout

    # Single XLA pass: cast + transpose (+pad) + free row-major reshape to the
    # sublane+lane dense layout (4, 8, Bc) where element (k, s, c) is
    # x[batch = s*Bc + c, feature k].
    x_t = jnp.transpose(x.astype(jnp.float32))     # (4, B)
    if b_pad != batch:
        x_t = jnp.pad(x_t, ((0, 0), (0, b_pad - batch)))
    x_s = x_t.reshape(INPUT_DIM, SUB, bc)

    # Tiny params as flat f32 vectors in SMEM.
    w1_flat = w1.reshape(-1).astype(jnp.float32)   # (12,)
    b1_flat = b1.reshape(-1).astype(jnp.float32)   # (3,)
    w2_flat = w2.reshape(-1).astype(jnp.float32)   # (3,)
    b2_flat = b2.reshape(-1).astype(jnp.float32)   # (1,)

    smem = pl.BlockSpec(memory_space=pltpu.MemorySpace.SMEM)
    vmem = pl.BlockSpec(memory_space=pltpu.MemorySpace.VMEM)

    if num_tiles == 1:
        # Fits one multi-MB block: no grid, no pipeline machinery at all.
        y_s = pl.pallas_call(
            mlp_kernel,
            out_shape=jax.ShapeDtypeStruct((SUB, bc), jnp.float32),
            in_specs=[vmem, smem, smem, smem, smem],
            out_specs=vmem,
        )(x_s, w1_flat, b1_flat, w2_flat, b2_flat)
    else:
        # Large batch: stream 2 MiB input tiles, auto double-buffered.
        # "parallel" shards tiles across v7x's two TensorCores (>=2 tiles by
        # construction here); neutral on single-TC v5e/v6e.
        tbl = tile_batch // SUB
        y_s = pl.pallas_call(
            mlp_kernel,
            out_shape=jax.ShapeDtypeStruct((SUB, bc), jnp.float32),
            grid=(num_tiles,),
            in_specs=[
                pl.BlockSpec((INPUT_DIM, SUB, tbl), lambda i: (0, 0, i)),
                smem, smem, smem, smem,
            ],
            out_specs=pl.BlockSpec((SUB, tbl), lambda i: (0, i)),
            compiler_params=pltpu.CompilerParams(
                dimension_semantics=("parallel",),
                # Double-buffered 2 MiB input + 0.5 MiB output blocks plus
                # headroom; above v5e's 16 MiB default, below v7x's 64 MiB.
                vmem_limit_bytes=32 * 1024 * 1024,
            ),
        )(x_s, w1_flat, b1_flat, w2_flat, b2_flat)

    # (8, Bc) row-major flatten is exactly batch order; drop the padding.
    # Result stays f32 (matches PyTorch promotion with f32 parameters).
    return y_s.reshape(b_pad)[:batch].reshape(batch, OUTPUT_DIM)


def init_params(key):
    """Deterministic init matching the PyTorch module's shapes/init scheme."""
    k1, k2, k3, k4 = jax.random.split(key, 4)

    # layer_1: kaiming_uniform_(nonlinearity='relu'): bound = sqrt(6 / fan_in)
    bound1_w = math.sqrt(6.0 / INPUT_DIM)
    w1 = jax.random.uniform(k1, (HIDDEN_DIM, INPUT_DIM),
                            minval=-bound1_w, maxval=bound1_w,
                            dtype=jnp.float32)
    bound1_b = 1.0 / math.sqrt(INPUT_DIM)
    b1 = jax.random.uniform(k2, (HIDDEN_DIM,),
                            minval=-bound1_b, maxval=bound1_b,
                            dtype=jnp.float32)

    # layer_2: default Linear init, U(-1/sqrt(fan_in), 1/sqrt(fan_in))
    bound2 = 1.0 / math.sqrt(HIDDEN_DIM)
    w2 = jax.random.uniform(k3, (OUTPUT_DIM, HIDDEN_DIM),
                            minval=-bound2, maxval=bound2, dtype=jnp.float32)
    b2 = jax.random.uniform(k4, (OUTPUT_DIM,),
                            minval=-bound2, maxval=bound2, dtype=jnp.float32)
    return w1, b1, w2, b2


def _reference(x, w1, b1, w2, b2):
    h = jnp.maximum(x.astype(jnp.float32) @ w1.T + b1, 0.0)
    return jnp.maximum(h @ w2.T + b2, 0.0)


if __name__ == "__main__":
    key = jax.random.PRNGKey(0)
    k_x1, k_x2, k_x3, k_p = jax.random.split(key, 4)
    w1, b1, w2, b2 = init_params(k_p)

    # 1) Tiny batch -> single-block (no-grid) path, single in-kernel chunk.
    x1 = jax.random.normal(k_x1, (8, INPUT_DIM), dtype=jnp.float32)
    y1 = jax.block_until_ready(neural_network_forward(x1, w1, b1, w2, b2))
    assert y1.shape == (8, OUTPUT_DIM)
    assert jnp.allclose(y1, _reference(x1, w1, b1, w2, b2), atol=1e-5, rtol=1e-5)

    # 2) Medium batch -> still one block; exercises the multi-chunk inner loop.
    x2 = jax.random.normal(k_x2, (5000, INPUT_DIM), dtype=jnp.float32)
    y2 = jax.block_until_ready(neural_network_forward(x2, w1, b1, w2, b2))
    assert y2.shape == (5000, OUTPUT_DIM)
    assert jnp.allclose(y2, _reference(x2, w1, b1, w2, b2), atol=1e-5, rtol=1e-5)

    # 3) Force the batch-tiled grid path (small tile override, 3 grid steps).
    x3 = jax.random.normal(k_x3, (3000, INPUT_DIM), dtype=jnp.float32)
    y3 = jax.block_until_ready(
        neural_network_forward(x3, w1, b1, w2, b2, tile_batch=1024))
    assert y3.shape == (3000, OUTPUT_DIM)
    assert jnp.allclose(y3, _reference(x3, w1, b1, w2, b2), atol=1e-5, rtol=1e-5)

    print("KERNEL_OK")
</pallas_src>

<mosaic_0001>
module attributes {stable_mosaic.version = 11 : i64} {
  func.func @mlp_kernel(%arg0: memref<4x8x128xf32, #tpu.memory_space<vmem>>, %arg1: memref<12xf32, #tpu.memory_space<smem>>, %arg2: memref<3xf32, #tpu.memory_space<smem>>, %arg3: memref<3xf32, #tpu.memory_space<smem>>, %arg4: memref<1xf32, #tpu.memory_space<smem>>, %arg5: memref<8x128xf32, #tpu.memory_space<vmem>>) attributes {dimension_semantics = [], scalar_prefetch = 0 : i64, scratch_operands = 0 : i64, tpu.core_type = #tpu.core_type<tc>} {
    %c0 = arith.constant 0 : index
    %0 = memref.load %arg1[%c0] : memref<12xf32, #tpu.memory_space<smem>>
    %c1 = arith.constant 1 : index
    %1 = memref.load %arg1[%c1] : memref<12xf32, #tpu.memory_space<smem>>
    %c2 = arith.constant 2 : index
    %2 = memref.load %arg1[%c2] : memref<12xf32, #tpu.memory_space<smem>>
    %c3 = arith.constant 3 : index
    %3 = memref.load %arg1[%c3] : memref<12xf32, #tpu.memory_space<smem>>
    %c4 = arith.constant 4 : index
    %4 = memref.load %arg1[%c4] : memref<12xf32, #tpu.memory_space<smem>>
    %c5 = arith.constant 5 : index
    %5 = memref.load %arg1[%c5] : memref<12xf32, #tpu.memory_space<smem>>
    %c6 = arith.constant 6 : index
    %6 = memref.load %arg1[%c6] : memref<12xf32, #tpu.memory_space<smem>>
    %c7 = arith.constant 7 : index
    %7 = memref.load %arg1[%c7] : memref<12xf32, #tpu.memory_space<smem>>
    %c8 = arith.constant 8 : index
    %8 = memref.load %arg1[%c8] : memref<12xf32, #tpu.memory_space<smem>>
    %c9 = arith.constant 9 : index
    %9 = memref.load %arg1[%c9] : memref<12xf32, #tpu.memory_space<smem>>
    %c10 = arith.constant 10 : index
    %10 = memref.load %arg1[%c10] : memref<12xf32, #tpu.memory_space<smem>>
    %c11 = arith.constant 11 : index
    %11 = memref.load %arg1[%c11] : memref<12xf32, #tpu.memory_space<smem>>
    %c0_0 = arith.constant 0 : index
    %12 = memref.load %arg2[%c0_0] : memref<3xf32, #tpu.memory_space<smem>>
    %c1_1 = arith.constant 1 : index
    %13 = memref.load %arg2[%c1_1] : memref<3xf32, #tpu.memory_space<smem>>
    %c2_2 = arith.constant 2 : index
    %14 = memref.load %arg2[%c2_2] : memref<3xf32, #tpu.memory_space<smem>>
    %c0_3 = arith.constant 0 : index
    %15 = memref.load %arg3[%c0_3] : memref<3xf32, #tpu.memory_space<smem>>
    %c1_4 = arith.constant 1 : index
    %16 = memref.load %arg3[%c1_4] : memref<3xf32, #tpu.memory_space<smem>>
    %c2_5 = arith.constant 2 : index
    %17 = memref.load %arg3[%c2_5] : memref<3xf32, #tpu.memory_space<smem>>
    %c0_6 = arith.constant 0 : index
    %18 = memref.load %arg4[%c0_6] : memref<1xf32, #tpu.memory_space<smem>>
    %c0_7 = arith.constant 0 : index
    %c0_8 = arith.constant 0 : index
    %c0_9 = arith.constant 0 : index
    %19 = vector.load %arg0[%c0_7, %c0_8, %c0_9] : memref<4x8x128xf32, #tpu.memory_space<vmem>>, vector<1x8x128xf32>
    %20 = vector.shape_cast %19 : vector<1x8x128xf32> to vector<8x128xf32>
    %c1_10 = arith.constant 1 : index
    %c0_11 = arith.constant 0 : index
    %c0_12 = arith.constant 0 : index
    %21 = vector.load %arg0[%c1_10, %c0_11, %c0_12] : memref<4x8x128xf32, #tpu.memory_space<vmem>>, vector<1x8x128xf32>
    %22 = vector.shape_cast %21 : vector<1x8x128xf32> to vector<8x128xf32>
    %c2_13 = arith.constant 2 : index
    %c0_14 = arith.constant 0 : index
    %c0_15 = arith.constant 0 : index
    %23 = vector.load %arg0[%c2_13, %c0_14, %c0_15] : memref<4x8x128xf32, #tpu.memory_space<vmem>>, vector<1x8x128xf32>
    %24 = vector.shape_cast %23 : vector<1x8x128xf32> to vector<8x128xf32>
    %c3_16 = arith.constant 3 : index
    %c0_17 = arith.constant 0 : index
    %c0_18 = arith.constant 0 : index
    %25 = vector.load %arg0[%c3_16, %c0_17, %c0_18] : memref<4x8x128xf32, #tpu.memory_space<vmem>>, vector<1x8x128xf32>
    %26 = vector.shape_cast %25 : vector<1x8x128xf32> to vector<8x128xf32>
    %27 = vector.broadcast %0 : f32 to vector<8x128xf32>
    %28 = arith.mulf %27, %20 : vector<8x128xf32>
    %29 = vector.broadcast %1 : f32 to vector<8x128xf32>
    %30 = arith.mulf %29, %22 : vector<8x128xf32>
    %31 = arith.addf %28, %30 : vector<8x128xf32>
    %32 = vector.broadcast %2 : f32 to vector<8x128xf32>
    %33 = arith.mulf %32, %24 : vector<8x128xf32>
    %34 = vector.broadcast %3 : f32 to vector<8x128xf32>
    %35 = arith.mulf %34, %26 : vector<8x128xf32>
    %36 = arith.addf %33, %35 : vector<8x128xf32>
    %37 = arith.addf %31, %36 : vector<8x128xf32>
    %38 = vector.broadcast %12 : f32 to vector<8x128xf32>
    %39 = arith.addf %37, %38 : vector<8x128xf32>
    %cst = arith.constant 0.000000e+00 : f32
    %40 = vector.broadcast %cst : f32 to vector<8x128xf32>
    %41 = arith.maximumf %39, %40 : vector<8x128xf32>
    %42 = vector.broadcast %15 : f32 to vector<8x128xf32>
    %43 = arith.mulf %42, %41 : vector<8x128xf32>
    %44 = vector.broadcast %4 : f32 to vector<8x128xf32>
    %45 = arith.mulf %44, %20 : vector<8x128xf32>
    %46 = vector.broadcast %5 : f32 to vector<8x128xf32>
    %47 = arith.mulf %46, %22 : vector<8x128xf32>
    %48 = arith.addf %45, %47 : vector<8x128xf32>
    %49 = vector.broadcast %6 : f32 to vector<8x128xf32>
    %50 = arith.mulf %49, %24 : vector<8x128xf32>
    %51 = vector.broadcast %7 : f32 to vector<8x128xf32>
    %52 = arith.mulf %51, %26 : vector<8x128xf32>
    %53 = arith.addf %50, %52 : vector<8x128xf32>
    %54 = arith.addf %48, %53 : vector<8x128xf32>
    %55 = vector.broadcast %13 : f32 to vector<8x128xf32>
    %56 = arith.addf %54, %55 : vector<8x128xf32>
    %cst_19 = arith.constant 0.000000e+00 : f32
    %57 = vector.broadcast %cst_19 : f32 to vector<8x128xf32>
    %58 = arith.maximumf %56, %57 : vector<8x128xf32>
    %59 = vector.broadcast %16 : f32 to vector<8x128xf32>
    %60 = arith.mulf %59, %58 : vector<8x128xf32>
    %61 = arith.addf %43, %60 : vector<8x128xf32>
    %62 = vector.broadcast %8 : f32 to vector<8x128xf32>
    %63 = arith.mulf %62, %20 : vector<8x128xf32>
    %64 = vector.broadcast %9 : f32 to vector<8x128xf32>
    %65 = arith.mulf %64, %22 : vector<8x128xf32>
    %66 = arith.addf %63, %65 : vector<8x128xf32>
    %67 = vector.broadcast %10 : f32 to vector<8x128xf32>
    %68 = arith.mulf %67, %24 : vector<8x128xf32>
    %69 = vector.broadcast %11 : f32 to vector<8x128xf32>
    %70 = arith.mulf %69, %26 : vector<8x128xf32>
    %71 = arith.addf %68, %70 : vector<8x128xf32>
    %72 = arith.addf %66, %71 : vector<8x128xf32>
    %73 = vector.broadcast %14 : f32 to vector<8x128xf32>
    %74 = arith.addf %72, %73 : vector<8x128xf32>
    %cst_20 = arith.constant 0.000000e+00 : f32
    %75 = vector.broadcast %cst_20 : f32 to vector<8x128xf32>
    %76 = arith.maximumf %74, %75 : vector<8x128xf32>
    %77 = vector.broadcast %17 : f32 to vector<8x128xf32>
    %78 = arith.mulf %77, %76 : vector<8x128xf32>
    %79 = arith.addf %61, %78 : vector<8x128xf32>
    %80 = vector.broadcast %18 : f32 to vector<8x128xf32>
    %81 = arith.addf %79, %80 : vector<8x128xf32>
    %cst_21 = arith.constant 0.000000e+00 : f32
    %82 = vector.broadcast %cst_21 : f32 to vector<8x128xf32>
    %83 = arith.maximumf %81, %82 : vector<8x128xf32>
    %c0_22 = arith.constant 0 : index
    %c0_23 = arith.constant 0 : index
    %84 = vector.load %arg5[%c0_22, %c0_23] : memref<8x128xf32, #tpu.memory_space<vmem>>, vector<8x128xf32>
    tpu.vector_store %arg5[%c0_22, %c0_23], %83 {strides = array<i32>} : memref<8x128xf32, #tpu.memory_space<vmem>>, vector<8x128xf32>,
    return
  }
}

</mosaic_0001>

<llo_original>
// kernel: tpu_custom_call.1
$region0: #{tpu_custom_call.1}
  #allocation0 [shape = 'u32[]', space=smem, size = 0x4, offset = 0x4, fixed_abs, tag = 'smem constant byte address 0x4 - core index']
  #allocation1 [shape = 'u32[144,128]{1,0:T(1,128)}', space=vmem, size = 0x12000, scoped, tag = 'internal scratch']
  #allocation2 [shape = 'f32[1]{0:T(128)S(6)}', space=smem, size = 0x200, scoped, tag = 'scoped memory for tpu_custom_call.1']
  %s0 = inlined_call_operand.hbm [shape: f32[4,8,128], index: 0, kind: input, shape index: {}]
  %s1 = inlined_call_operand.vmem [shape: f32[12], index: 1, kind: input, shape index: {}]
  %s2 = inlined_call_operand.vmem [shape: f32[3], index: 2, kind: input, shape index: {}]
  %s3 = inlined_call_operand.vmem [shape: f32[3], index: 3, kind: input, shape index: {}]
  %s4 = inlined_call_operand.<no memory space> [shape: f32[1], index: 4, kind: input, shape index: {}]
  %s5 = inlined_call_operand.hbm [shape: f32[8,128], index: 5, kind: output, shape index: {}]
  %s6 = sld [smem:[#allocation0]]
  $region46: #{tpu_custom_call.1} parent=0
    _
  %s8 = ssub.s32 1, %s6
  %s9 = scalar_select 0, %s8, %s6
  %10 = sst [smem:[#allocation2]] %s4
  $region1: #{tpu_custom_call.1} parent=0
    #allocation3 [shape = 'u8[16384]{0}', space=vmem, size = 0x4000, scoped, tag = 'input window, operand 0, single buffered']
    #allocation4 [shape = 's32[1]{0}', space=sflag, size = 0x4, scoped, tag = 'scoped memory for tpu_custom_call.1']
    #allocation5 [shape = 's32[1]{0}', space=sflag, size = 0x4, scoped, tag = 'scoped memory for tpu_custom_call.1']
    #allocation6 [shape = 's32[1]{0}', space=sflag, size = 0x4, scoped, tag = 'scoped memory for tpu_custom_call.1']
    #allocation7 [shape = 'u8[512]{0}', space=smem, size = 0x200, scoped, tag = 'input window, operand 1, single buffered']
    #allocation8 [shape = 'u8[512]{0}', space=smem, size = 0x200, scoped, tag = 'input window, operand 2, single buffered']
    #allocation9 [shape = 's32[1]{0}', space=sflag, size = 0x4, scoped, tag = 'scoped memory for tpu_custom_call.1']
    #allocation10 [shape = 'u8[512]{0}', space=smem, size = 0x200, scoped, tag = 'input window, operand 3, single buffered']
    #allocation11 [shape = 'u8[4096]{0}', space=vmem, size = 0x1000, scoped, tag = 'output window, operand 0, single buffered']
    %11 = vsyncpa [#allocation4], 0
    %12 = vsyncpa [#allocation6], 0
    %13 = vsyncpa [#allocation9], 0
    %14 = vsyncpa [#allocation5], 0
    // Predicated region
    $region2: #{tpu_custom_call.1} parent=1 // pred_check
      _
    $region3: #{tpu_custom_call.1} parent=1 // pred_check_branch
      %16 = sbr.rel (0) target = $region5
    $region4: #{tpu_custom_call.1} parent=1 // pred_region
      %s18 = ssub.s32 512, 512
      %19 = vsyncadd [#allocation4], %s18
      %s20 = sshll.u32 [#allocation3], 4
      %s21 = int_to_ptr.vmem [resolvable:$true] %s20
      %26 = dma.hbm_to_vmem [thread:$0]  %s0, 512, %s21, [#allocation4], 128, 128, 8
    $region5: #{tpu_custom_call.1} parent=1 // pred_fallthru
      _
    // Predicated region
    $region6: #{tpu_custom_call.1} parent=1 // pred_check
      _
    $region7: #{tpu_custom_call.1} parent=1 // pred_check_branch
      %28 = sbr.rel (0) target = $region9
    $region8: #{tpu_custom_call.1} parent=1 // pred_region
      %s30 = ssub.s32 16, 16
      %31 = vsyncadd [#allocation6], %s30
      %s33 = sshll.u32 %s1, 4
      %s34 = int_to_ptr.vmem [resolvable:$true] %s33
      %36 = dma.vmem_to_smem %s34, 16, [#allocation7], [#allocation6]
    $region9: #{tpu_custom_call.1} parent=1 // pred_fallthru
      _
    // Predicated region
    $region10: #{tpu_custom_call.1} parent=1 // pred_check
      _
    $region11: #{tpu_custom_call.1} parent=1 // pred_check_branch
      %38 = sbr.rel (0) target = $region13
    $region12: #{tpu_custom_call.1} parent=1 // pred_region
      %s40 = ssub.s32 16, 16
      %41 = vsyncadd [#allocation9], %s40
      %s43 = sshll.u32 %s2, 4
      %s44 = int_to_ptr.vmem [resolvable:$true] %s43
      %46 = dma.vmem_to_smem %s44, 16, [#allocation8], [#allocation9]
    $region13: #{tpu_custom_call.1} parent=1 // pred_fallthru
      _
    // Predicated region
    $region14: #{tpu_custom_call.1} parent=1 // pred_check
      _
    $region15: #{tpu_custom_call.1} parent=1 // pred_check_branch
      %48 = sbr.rel (0) target = $region17
    $region16: #{tpu_custom_call.1} parent=1 // pred_region
      %s50 = ssub.s32 16, 16
      %51 = vsyncadd [#allocation9], %s50
      %s53 = sshll.u32 %s3, 4
      %s54 = int_to_ptr.vmem [resolvable:$true] %s53
      %56 = dma.vmem_to_smem %s54, 16, [#allocation10], [#allocation9]
    $region17: #{tpu_custom_call.1} parent=1 // pred_fallthru
      _
    // Predicated region
    $region18: #{tpu_custom_call.1} parent=1 // pred_check
      _
    $region19: #{tpu_custom_call.1} parent=1 // pred_check_branch
      %58 = sbr.rel (0) target = $region21
    $region20: #{tpu_custom_call.1} parent=1 // pred_region
      _
    $region21: #{tpu_custom_call.1} parent=1 // pred_fallthru
      _
    // Predicated region
    $region22: #{tpu_custom_call.1} parent=1 // pred_check
      _
    $region23: #{tpu_custom_call.1} parent=1 // pred_check_branch
      %60 = sbr.rel (0) target = $region25
    $region24: #{tpu_custom_call.1} parent=1 // pred_region
      %61 = dma.done [#allocation4], 512
    $region25: #{tpu_custom_call.1} parent=1 // pred_fallthru
      _
    // Predicated region
    $region26: #{tpu_custom_call.1} parent=1 // pred_check
      _
    $region27: #{tpu_custom_call.1} parent=1 // pred_check_branch
      %63 = sbr.rel (0) target = $region29
    $region28: #{tpu_custom_call.1} parent=1 // pred_region
      %64 = dma.done [#allocation6], 16
    $region29: #{tpu_custom_call.1} parent=1 // pred_fallthru
      _
    // Predicated region
    $region30: #{tpu_custom_call.1} parent=1 // pred_check
      _
    $region31: #{tpu_custom_call.1} parent=1 // pred_check_branch
      %66 = sbr.rel (0) target = $region33
    $region32: #{tpu_custom_call.1} parent=1 // pred_region
      %67 = dma.done [#allocation9], 16
    $region33: #{tpu_custom_call.1} parent=1 // pred_fallthru
      _
    // Predicated region
    $region34: #{tpu_custom_call.1} parent=1 // pred_check
      _
    $region35: #{tpu_custom_call.1} parent=1 // pred_check_branch
      %69 = sbr.rel (0) target = $region37
    $region36: #{tpu_custom_call.1} parent=1 // pred_region
      %70 = dma.done [#allocation9], 16
    $region37: #{tpu_custom_call.1} parent=1 // pred_fallthru
      _
    %71 = sfence
    %s72 = sld [smem:[#allocation7]]
    %s73 = sld [smem:[#allocation7 + $0x1]]
    %s74 = sld [smem:[#allocation7 + $0x2]]
    %s75 = sld [smem:[#allocation7 + $0x3]]
    %s76 = sld [smem:[#allocation7 + $0x4]]
    %s77 = sld [smem:[#allocation7 + $0x5]]
    %s78 = sld [smem:[#allocation7 + $0x6]]
    %s79 = sld [smem:[#allocation7 + $0x7]]
    %s80 = sld [smem:[#allocation7 + $0x8]]
    %s81 = sld [smem:[#allocation7 + $0x9]]
    %s82 = sld [smem:[#allocation7 + $0xa]]
    %s83 = sld [smem:[#allocation7 + $0xb]]
    %s84 = sld [smem:[#allocation8]]
    %s85 = sld [smem:[#allocation8 + $0x1]]
    %s86 = sld [smem:[#allocation8 + $0x2]]
    %s87 = sld [smem:[#allocation10]]
    %s88 = sld [smem:[#allocation10 + $0x1]]
    %s89 = sld [smem:[#allocation10 + $0x2]]
    %s90 = sld [smem:[#allocation2]]
    %v91 = vld [vmem:[#allocation3] sm:$0xff]
    %s92 = scalar_lea.vmem [#allocation3], 8
    %v93 = vld [vmem:[%s92] sm:$0xff]
    %s94 = scalar_lea.vmem [#allocation3], 16
    %v95 = vld [vmem:[%s94] sm:$0xff]
    %s96 = scalar_lea.vmem [#allocation3], 24
    %v97 = vld [vmem:[%s96] sm:$0xff]
    %v98 = vstv %s72
    %v99 = vmul.f32 %v98, %v91
    %v100 = vstv %s73
    %v101 = vmul.f32 %v100, %v93
    %v102 = vadd.f32 %v99, %v101
    %v103 = vstv %s74
    %v104 = vmul.f32 %v103, %v95
    %v105 = vstv %s75
    %v106 = vmul.f32 %v105, %v97
    %v107 = vadd.f32 %v104, %v106
    %v108 = vadd.f32 %v102, %v107
    %v109 = vstv %s84
    %v110 = vadd.f32 %v108, %v109
    %v111 = vmax.f32 %v110, 0.0
    %v112 = vstv %s87
    %v113 = vmul.f32 %v112, %v111
    %v114 = vstv %s76
    %v115 = vmul.f32 %v114, %v91
    %v116 = vstv %s77
    %v117 = vmul.f32 %v116, %v93
    %v118 = vadd.f32 %v115, %v117
    %v119 = vstv %s78
    %v120 = vmul.f32 %v119, %v95
    %v121 = vstv %s79
    %v122 = vmul.f32 %v121, %v97
    %v123 = vadd.f32 %v120, %v122
    %v124 = vadd.f32 %v118, %v123
    %v125 = vstv %s85
    %v126 = vadd.f32 %v124, %v125
    %v127 = vmax.f32 %v126, 0.0
    %v128 = vstv %s88
    %v129 = vmul.f32 %v128, %v127
    %v130 = vadd.f32 %v113, %v129
    %v131 = vstv %s80
    %v132 = vmul.f32 %v131, %v91
    %v133 = vstv %s81
    %v134 = vmul.f32 %v133, %v93
    %v135 = vadd.f32 %v132, %v134
    %v136 = vstv %s82
    %v137 = vmul.f32 %v136, %v95
    %v138 = vstv %s83
    %v139 = vmul.f32 %v138, %v97
    %v140 = vadd.f32 %v137, %v139
    %v141 = vadd.f32 %v135, %v140
    %v142 = vstv %s86
    %v143 = vadd.f32 %v141, %v142
    %v144 = vmax.f32 %v143, 0.0
    %v145 = vstv %s89
    %v146 = vmul.f32 %v145, %v144
    %v147 = vadd.f32 %v130, %v146
    %v148 = vstv %s90
    %v149 = vadd.f32 %v147, %v148
    %v150 = vmax.f32 %v149, 0.0
    %151 = vst [vmem:[#allocation11] sm:$0xff] %v150
    // Predicated region
    $region38: #{tpu_custom_call.1} parent=1 // pred_check
      _
    $region39: #{tpu_custom_call.1} parent=1 // pred_check_branch
      %153 = sbr.rel (0) target = $region41
    $region40: #{tpu_custom_call.1} parent=1 // pred_region
      %s155 = ssub.s32 128, 128
      %156 = vsyncadd [#allocation5], %s155
      %s158 = sshll.u32 [#allocation11], 4
      %s159 = int_to_ptr.vmem [resolvable:$true] %s158
      %161 = dma.vmem_to_hbm [thread:$0]  %s159, 128, %s5, [#allocation5]
    $region41: #{tpu_custom_call.1} parent=1 // pred_fallthru
      _
    // Predicated region
    $region42: #{tpu_custom_call.1} parent=1 // pred_check
      _
    $region43: #{tpu_custom_call.1} parent=1 // pred_check_branch
      %163 = sbr.rel (0) target = $region45
    $region44: #{tpu_custom_call.1} parent=1 // pred_region
      %164 = dma.done [#allocation5], 128
    $region45: #{tpu_custom_call.1} parent=1 // pred_fallthru
      _
    %165 = vsyncpa [#allocation4], 1
    %166 = vsyncpa [#allocation5], 1
    %167 = vsyncpa [#allocation6], 1
    %168 = vsyncpa [#allocation9], 1

</llo_original>
